<compile_context>
chip_gen: v6e
topology: v6e:2x2x1
jax: 0.10.0
libtpu: 0.0.40
codegen_flags: <defaults>
</compile_context>

<pallas_src>
import functools

import jax
import jax.numpy as jnp
import numpy as np
from jax.experimental import pallas as pl
from jax.experimental.pallas import tpu as pltpu

BN_EPS = 1e-5


def _round_up(a, b):
    return (a + b - 1) // b * b


# --------------------------- Pallas kernel -----------------------------------

def conv_stats_kernel(w_ref, patch_ref, conv_ref, stats_ref):
    """Fused dilated-conv matmul (channel-major) + partial BN stats, one row tile.

    w_ref:     (Coutp, K)   fused 3x3 tap weights, Cout zero-padded to mult. of 8
    patch_ref: (K, TR)      im2col columns for this row tile (compute dtype)
    conv_ref:  (Coutp, TR)  f32 conv output tile (TR lanes -> unmasked vst)
    stats_ref: (Coutp, 2)   col 0 = per-channel sum, col 1 = per-channel sum-sq
    """
    acc = jnp.dot(w_ref[...], patch_ref[...],
                  preferred_element_type=jnp.float32)    # one MXU push, K = 9*Cin
    conv_ref[...] = acc
    # Cross-lane reductions go to the XLU (free slot at these shapes).
    stats_ref[:, 0:1] = jnp.sum(acc, axis=1, keepdims=True)
    stats_ref[:, 1:2] = jnp.sum(acc * acc, axis=1, keepdims=True)


# ------------------------------ wrapper ---------------------------------------

def _vmem_limits():
    """(scoped vmem limit, tile-sizing budget) in bytes, per TensorCore."""
    try:
        cap = int(pltpu.get_tpu_info().vmem_capacity_bytes)
    except Exception:           # conservative fallback = v7x per-TC capacity
        cap = 64 * 1024 * 1024
    # 128 MiB parts (v5e/v6e) -> 64 MiB limit; 64 MiB parts (v7x) -> 48 MiB.
    limit = min(max(cap - 16 * 1024 * 1024, 32 * 1024 * 1024), 64 * 1024 * 1024)
    return limit, limit - 8 * 1024 * 1024


def atrous_module_forward(x_nchw, weight_oihw, bias, gamma, beta, rate, *,
                          tile_rows=1024, compute_dtype=jnp.float32):
    """x_nchw: (N, Cin, H, W) f32 -> (N, Cout, H, W) f32 (PyTorch semantics).

    `bias` is accepted for interface parity but not added inside the kernel:
    training-mode BatchNorm's mean subtraction cancels a per-channel constant.
    """
    del bias  # cancelled exactly by BN mean subtraction
    N, Cin, H, W = x_nchw.shape
    Cout = weight_oihw.shape[0]
    K = 9 * Cin
    Coutp = _round_up(Cout, 8)            # sublane padding only (not 128 lanes)
    R = N * H * W
    in_bytes = jnp.dtype(compute_dtype).itemsize

    # ---- row-tile selection: biggest multiple of 128 fitting the VMEM budget
    vmem_limit, vmem_budget = _vmem_limits()
    TR = min(_round_up(tile_rows, 128), _round_up(R, 128))

    def _wset(tr):                         # double-buffered working set / step
        return (2 * K * tr * in_bytes      # patches tile
                + 2 * Coutp * tr * 4       # conv tile (f32)
                + 2 * Coutp * K * in_bytes # weights (constant index_map)
                + 2 * Coutp * 2 * 4)       # stats tile

    while TR > 256 and _wset(TR) > vmem_budget:
        TR = _round_up(TR // 2, 128)
    R_pad = _round_up(R, TR)
    num_tiles = R_pad // TR

    # ---- XLA glue: spatial pad + channel-major im2col (patches^T) -----------
    # TODO(synk): for very large Cin, skip materializing patches^T in HBM and
    # instead DMA a spatial halo block per tile (memory_space=pl.ANY),
    # accumulating the 9 taps in-VMEM; at small Cin the materialized form wins.
    x_sp = jnp.pad(x_nchw, ((0, 0), (0, 0), (rate, rate), (rate, rate)))
    taps = [x_sp[:, :, kh * rate:kh * rate + H, kw * rate:kw * rate + W]
            for kh in range(3) for kw in range(3)]            # 9 x (N,Cin,H,W)
    patches_t = (jnp.stack(taps, axis=0)                      # (9,N,Cin,H,W)
                 .transpose(0, 2, 1, 3, 4)                    # (9,Cin,N,H,W)
                 .reshape(K, R))
    patches_t = jnp.pad(patches_t,
                        ((0, 0), (0, R_pad - R))).astype(compute_dtype)

    w2d = jnp.transpose(weight_oihw, (0, 2, 3, 1)).reshape(Cout, K)  # tap-major K
    w2d = jnp.pad(w2d, ((0, Coutp - Cout), (0, 0))).astype(compute_dtype)

    cparams = pltpu.CompilerParams(
        dimension_semantics=("parallel",),   # shard row tiles across TCs (v7x)
        vmem_limit_bytes=vmem_limit,
    )

    # ---- single Pallas pass: conv matmul + per-tile partial BN statistics ---
    # (Weights have a constant index_map; pl.Buffered(1) could halve their VMEM
    #  footprint — left default double-buffered here since they are small.)
    conv_t, stats = pl.pallas_call(
        conv_stats_kernel,
        out_shape=(jax.ShapeDtypeStruct((Coutp, R_pad), jnp.float32),
                   jax.ShapeDtypeStruct((num_tiles * Coutp, 2), jnp.float32)),
        grid=(num_tiles,),
        in_specs=[pl.BlockSpec((Coutp, K), lambda i: (0, 0)),
                  pl.BlockSpec((K, TR), lambda i: (0, i))],
        out_specs=(pl.BlockSpec((Coutp, TR), lambda i: (0, i)),
                   pl.BlockSpec((Coutp, 2), lambda i: (i, 0))),
        compiler_params=cparams,
    )(w2d, patches_t)

    # ---- tiny O(num_tiles x Coutp) stat reduction + affine folding (XLA) ----
    tot = jnp.sum(stats.reshape(num_tiles, Coutp, 2), axis=0)[:Cout]  # (Cout,2)
    count = jnp.float32(R)                     # padded rows are exact zeros
    mean = tot[:, 0] / count
    var = jnp.maximum(tot[:, 1] / count - mean * mean, 0.0)
    # TODO(synk): E[x^2]-E[x]^2 in f32 can lose precision for very large R with
    # large activation means; switch to a shifted / Welford combine if needed.
    inv = jax.lax.rsqrt(var + BN_EPS)
    scale = gamma.astype(jnp.float32) * inv
    shift = beta.astype(jnp.float32) - mean * scale

    # Affine + un-pad + NCHW epilogue: pure elementwise/layout work, fused by
    # XLA (no second Pallas pass -> one fewer full read+write of conv tensor).
    y = conv_t[:Cout, :R] * scale[:, None] + shift[:, None]
    return jnp.transpose(y.reshape(Cout, N, H, W), (1, 0, 2, 3))


# ------------------------------ reference -------------------------------------

def reference_forward(x, weight, bias, gamma, beta, rate):
    """Pure-JAX reference (conv_general_dilated + batch-stat BN)."""
    Cout = weight.shape[0]
    conv = jax.lax.conv_general_dilated(
        x, weight, window_strides=(1, 1),
        padding=[(rate, rate), (rate, rate)],
        rhs_dilation=(rate, rate),
        dimension_numbers=("NCHW", "OIHW", "NCHW"))
    conv = conv + bias.reshape(1, Cout, 1, 1)
    mean = conv.mean(axis=(0, 2, 3), keepdims=True)
    var = ((conv - mean) ** 2).mean(axis=(0, 2, 3), keepdims=True)
    return ((conv - mean) * jax.lax.rsqrt(var + BN_EPS)
            * gamma.reshape(1, Cout, 1, 1) + beta.reshape(1, Cout, 1, 1))


if __name__ == "__main__":
    # Small shapes consistent with Atrous_module(inplanes=4, planes=8, rate=2)
    N, Cin, Cout, H, W, rate = 2, 4, 8, 16, 16, 2

    key = jax.random.PRNGKey(0)
    k_x, k_w, k_b, k_g, k_be = jax.random.split(key, 5)

    x = jax.random.normal(k_x, (N, Cin, H, W), dtype=jnp.float32)
    weight = 0.1 * jax.random.normal(k_w, (Cout, Cin, 3, 3), dtype=jnp.float32)
    bias = 0.1 * jax.random.normal(k_b, (Cout,), dtype=jnp.float32)
    gamma = 1.0 + 0.1 * jax.random.normal(k_g, (Cout,), dtype=jnp.float32)
    beta = 0.1 * jax.random.normal(k_be, (Cout,), dtype=jnp.float32)

    ref = reference_forward(x, weight, bias, gamma, beta, rate)

    # f32 path: tight-tolerance check, valid on every TPU generation.
    fwd_f32 = jax.jit(functools.partial(
        atrous_module_forward, rate=rate, compute_dtype=jnp.float32))
    out_f32 = jax.block_until_ready(fwd_f32(x, weight, bias, gamma, beta))
    np.testing.assert_allclose(np.asarray(out_f32), np.asarray(ref),
                               rtol=1e-4, atol=1e-4)

    # bf16 input path (recommended on v6e/v7x): native bf16 MXU + halved
    # patch/weight HBM traffic; f32 accumulation and BN math, so only input
    # quantization error remains -> relaxed tolerance.
    fwd_bf16 = jax.jit(functools.partial(
        atrous_module_forward, rate=rate, compute_dtype=jnp.bfloat16))
    out_bf16 = jax.block_until_ready(fwd_bf16(x, weight, bias, gamma, beta))
    np.testing.assert_allclose(np.asarray(out_bf16), np.asarray(ref),
                               rtol=3e-2, atol=3e-2)

    print("KERNEL_OK")
</pallas_src>

<mosaic_0001>
module attributes {stable_mosaic.version = 11 : i64} {
  func.func @conv_stats_kernel(%arg0: i32, %arg1: memref<8x36xf32, #tpu.memory_space<vmem>>, %arg2: memref<36x512xf32, #tpu.memory_space<vmem>>, %arg3: memref<8x512xf32, #tpu.memory_space<vmem>>, %arg4: memref<8x2xf32, #tpu.memory_space<vmem>>) attributes {dimension_semantics = [#tpu.dimension_semantics<parallel>], iteration_bounds = array<i64: 1>, scalar_prefetch = 0 : i64, scratch_operands = 0 : i64, tpu.core_type = #tpu.core_type<tc>, window_params = [{pipeline_mode = #tpu.pipeline_mode<synchronous>, transform_indices = @transform_0, window_bounds = array<i64: 8, 36>}, {transform_indices = @transform_1, window_bounds = array<i64: 36, 512>}, {transform_indices = @transform_2, window_bounds = array<i64: 8, 512>}, {transform_indices = @transform_3, window_bounds = array<i64: 8, 2>}]} {
    %c0 = arith.constant 0 : index
    %c0_0 = arith.constant 0 : index
    %0 = vector.load %arg1[%c0, %c0_0] : memref<8x36xf32, #tpu.memory_space<vmem>>, vector<8x36xf32>
    %c0_1 = arith.constant 0 : index
    %c0_2 = arith.constant 0 : index
    %1 = vector.load %arg2[%c0_1, %c0_2] : memref<36x512xf32, #tpu.memory_space<vmem>>, vector<36x512xf32>
    %cst = arith.constant dense<0.000000e+00> : vector<8x512xf32>
    %2 = tpu.matmul %0, %1, %cst {dimension_numbers = #tpu.dot_dimension_numbers<[1], [0], [0], [1], [0, 0, 1, 1], [], []>} : vector<8x36xf32>, vector<36x512xf32>, vector<8x512xf32> -> vector<8x512xf32>
    %c0_3 = arith.constant 0 : index
    %c0_4 = arith.constant 0 : index
    %3 = vector.load %arg3[%c0_3, %c0_4] : memref<8x512xf32, #tpu.memory_space<vmem>>, vector<8x512xf32>
    tpu.vector_store %arg3[%c0_3, %c0_4], %2 {strides = array<i32>} : memref<8x512xf32, #tpu.memory_space<vmem>>, vector<8x512xf32>,
    %cst_5 = arith.constant dense<0.000000e+00> : vector<8xf32>
    %4 = vector.multi_reduction <add>, %2, %cst_5 [1] : vector<8x512xf32> to vector<8xf32>
    %5 = vector.shape_cast %4 : vector<8xf32> to vector<8x1xf32>
    %c0_6 = arith.constant 0 : index
    %c0_7 = arith.constant 0 : index
    %6 = vector.load %arg4[%c0_6, %c0_7] : memref<8x2xf32, #tpu.memory_space<vmem>>, vector<8x1xf32>
    tpu.vector_store %arg4[%c0_6, %c0_7], %5 {strides = array<i32>} : memref<8x2xf32, #tpu.memory_space<vmem>>, vector<8x1xf32>,
    %7 = arith.mulf %2, %2 : vector<8x512xf32>
    %cst_8 = arith.constant dense<0.000000e+00> : vector<8xf32>
    %8 = vector.multi_reduction <add>, %7, %cst_8 [1] : vector<8x512xf32> to vector<8xf32>
    %9 = vector.shape_cast %8 : vector<8xf32> to vector<8x1xf32>
    %c0_9 = arith.constant 0 : index
    %c1 = arith.constant 1 : index
    %10 = vector.load %arg4[%c0_9, %c1] : memref<8x2xf32, #tpu.memory_space<vmem>>, vector<8x1xf32>
    tpu.vector_store %arg4[%c0_9, %c1], %9 {strides = array<i32>} : memref<8x2xf32, #tpu.memory_space<vmem>>, vector<8x1xf32>,
    return
  }
  func.func @transform_0(%arg0: i32) -> (i32, i32) {
    %c0_i32 = arith.constant 0 : i32
    %c0_i32_0 = arith.constant 0 : i32
    %c0_i32_1 = arith.constant 0 : i32
    return %c0_i32, %c0_i32_0 : i32, i32
  }
  func.func @transform_1(%arg0: i32) -> (i32, i32) {
    %c0_i32 = arith.constant 0 : i32
    %c0_i32_0 = arith.constant 0 : i32
    return %c0_i32, %arg0 : i32, i32
  }
  func.func @transform_2(%arg0: i32) -> (i32, i32) {
    %c0_i32 = arith.constant 0 : i32
    %c0_i32_0 = arith.constant 0 : i32
    return %c0_i32, %arg0 : i32, i32
  }
  func.func @transform_3(%arg0: i32) -> (i32, i32) {
    %c0_i32 = arith.constant 0 : i32
    %c0_i32_0 = arith.constant 0 : i32
    return %arg0, %c0_i32 : i32, i32
  }
}

</mosaic_0001>

<llo_original>
// kernel: atrous_module_forward.1
$region0: #{atrous_module_forward.1}
  #allocation0 [shape = 'u32[]', space=smem, size = 0x4, offset = 0x4, fixed_abs, tag = 'smem constant byte address 0x4 - core index']
  #allocation1 [shape = 'u32[144,128]{1,0:T(1,128)}', space=vmem, size = 0x12000, scoped, tag = 'internal scratch']
  %s0 = inlined_call_operand.vmem [shape: f32[8,36], index: 0, kind: input, shape index: {}]
  %s1 = inlined_call_operand.vmem [shape: f32[36,512], index: 1, kind: input, shape index: {}]
  %s2 = inlined_call_operand.vmem [shape: f32[8,512], index: 2, kind: output, shape index: {0}]
  %s3 = inlined_call_operand.vmem [shape: f32[8,2], index: 3, kind: output, shape index: {1}]
  %4 = xla_tuple %s2, %s3
  %s5 = sld [smem:[#allocation0]]
  $region26: #{atrous_module_forward.1} parent=0
    _
  %s7 = ssub.s32 1, %s5
  %s8 = scalar_select 0, %s7, %s5
  // Predicated region
  $region2: #{atrous_module_forward.1} parent=0 // pred_check
    _
  $region3: #{atrous_module_forward.1} parent=0 // pred_check_branch
    %10 = sbr.rel (0) target = $region5
  $region4: #{atrous_module_forward.1} parent=0 // pred_region
    _
  $region5: #{atrous_module_forward.1} parent=0 // pred_fallthru
    _
  // Predicated region
  $region6: #{atrous_module_forward.1} parent=0 // pred_check
    _
  $region7: #{atrous_module_forward.1} parent=0 // pred_check_branch
    %12 = sbr.rel (0) target = $region9
  $region8: #{atrous_module_forward.1} parent=0 // pred_region
    _
  $region9: #{atrous_module_forward.1} parent=0 // pred_fallthru
    _
  %v13 = vld [vmem:[%s0] sm:$0xff]
  %v14 = vld [vmem:[%s1] sm:$0xff]
  %v15 = vld [vmem:[%s1 + $0x8] sm:$0xff]
  %v16 = vld [vmem:[%s1 + $0x10] sm:$0xff]
  %v17 = vld [vmem:[%s1 + $0x18] sm:$0xff]
  %v18 = vld [vmem:[%s1 + $0x20] sm:$0xff]
  %v19 = vld [vmem:[%s1 + $0x28] sm:$0xff]
  %v20 = vld [vmem:[%s1 + $0x30] sm:$0xff]
  %v21 = vld [vmem:[%s1 + $0x38] sm:$0xff]
  %v22 = vld [vmem:[%s1 + $0x40] sm:$0xff]
  %v23 = vld [vmem:[%s1 + $0x48] sm:$0xff]
  %v24 = vld [vmem:[%s1 + $0x50] sm:$0xff]
  %v25 = vld [vmem:[%s1 + $0x58] sm:$0xff]
  %v26 = vld [vmem:[%s1 + $0x60] sm:$0xff]
  %v27 = vld [vmem:[%s1 + $0x68] sm:$0xff]
  %v28 = vld [vmem:[%s1 + $0x70] sm:$0xff]
  %v29 = vld [vmem:[%s1 + $0x78] sm:$0xff]
  %v30 = vld [vmem:[%s1 + $0x80] sm:$0xf]
  %v31 = vld [vmem:[%s1 + $0x88] sm:$0xf]
  %v32 = vld [vmem:[%s1 + $0x90] sm:$0xf]
  %v33 = vld [vmem:[%s1 + $0x98] sm:$0xf]
  %vm34 = vcmask 293888
  %v36 = vsel %vm34, %v13, 0
  %vm38 = vcmask 1043456
  %v40 = vsel %vm38, %v30, 0
  %v43 = vsel %vm38, %v31, 0
  %v46 = vsel %vm38, %v32, 0
  %v49 = vsel %vm38, %v33, 0
  %51 = vmatprep.subr.mxu0 0.0
  %52 = vmatpush1.msra.mxu0 0.0
  %53 = vmatprep.subr.mxu0 0.0
  %54 = vmatpush1.msra.mxu0 0.0
  %55 = vmatprep.subr.mxu0 0.0
  %56 = vmatpush1.msra.mxu0 0.0
  %57 = vmatprep.subr.mxu0 0.0
  %58 = vmatpush1.msra.mxu0 0.0
  %59 = vmatprep.subr.mxu0 0.0
  %60 = vmatpush1.msra.mxu0 0.0
  %61 = vmatprep.subr.mxu0 0.0
  %62 = vmatpush1.msra.mxu0 0.0
  %63 = vmatprep.subr.mxu0 0.0
  %64 = vmatpush1.msra.mxu0 0.0
  %65 = vmatprep.subr.mxu0 0.0
  %66 = vmatpush1.msra.mxu0 0.0
  %67 = vmatprep.subr.mxu0 0.0
  %68 = vmatpush1.msra.mxu0 0.0
  %69 = vmatprep.subr.mxu0 0.0
  %70 = vmatpush1.msra.mxu0 0.0
  %71 = vmatprep.subr.mxu0 0.0
  %72 = vmatpush1.msra.mxu0 0.0
  %73 = vmatprep.subr.mxu0 %v43
  %74 = vmatpush1.msra.mxu0 %v40
  %75 = vmatprep.subr.mxu0 %v27
  %76 = vmatpush1.msra.mxu0 %v26
  %77 = vmatprep.subr.mxu0 %v23
  %78 = vmatpush1.msra.mxu0 %v22
  %79 = vmatprep.subr.mxu0 %v19
  %80 = vmatpush1.msra.mxu0 %v18
  %81 = vmatprep.subr.mxu0 %v15
  %82 = vmatpush1.msra.mxu0 %v14
  %83 = vmatprep.subr.mxu0 0.0
  %84 = vmatpush2.msra.mxu0 0.0
  %85 = vmatprep.subr.mxu0 0.0
  %86 = vmatpush2.msra.mxu0 0.0
  %87 = vmatprep.subr.mxu0 0.0
  %88 = vmatpush2.msra.mxu0 0.0
  %89 = vmatprep.subr.mxu0 0.0
  %90 = vmatpush2.msra.mxu0 0.0
  %91 = vmatprep.subr.mxu0 0.0
  %92 = vmatpush2.msra.mxu0 0.0
  %93 = vmatprep.subr.mxu0 0.0
  %94 = vmatpush2.msra.mxu0 0.0
  %95 = vmatprep.subr.mxu0 0.0
  %96 = vmatpush2.msra.mxu0 0.0
  %97 = vmatprep.subr.mxu0 0.0
  %98 = vmatpush2.msra.mxu0 0.0
  %99 = vmatprep.subr.mxu0 0.0
  %100 = vmatpush2.msra.mxu0 0.0
  %101 = vmatprep.subr.mxu0 0.0
  %102 = vmatpush2.msra.mxu0 0.0
  %103 = vmatprep.subr.mxu0 0.0
  %104 = vmatpush2.msra.mxu0 0.0
  %105 = vmatprep.subr.mxu0 0.0
  %106 = vmatpush2.msra.mxu0 0.0
  %107 = vmatprep.subr.mxu0 0.0
  %108 = vmatpush2.msra.mxu0 0.0
  %109 = vmatprep.subr.mxu0 0.0
  %110 = vmatpush2.msra.mxu0 0.0
  %111 = vmatprep.subr.mxu0 0.0
  %112 = vmatpush2.msra.mxu0 0.0
  %113 = vmatprep.subr.mxu0 0.0
  %114 = vmatpush2.msra.mxu0 0.0
  %115 = vmatprep.mubr.f32.mxu0 0.0
  %116 = vmatmul.mubr.f32.gmra.mxu0 %v36
  %v117 = vpop.f32.mrf.mxu0
  %v118 = vadd.f32 0.0, %v117
  %v119 = vpop.f32.mrf.mxu0
  %v120 = vadd.f32 0.0, %v119
  %121 = vdwg.mxu0
  %122 = vmatprep.subr.mxu0 0.0
  %123 = vmatpush1.msra.mxu0 0.0
  %124 = vmatprep.subr.mxu0 0.0
  %125 = vmatpush1.msra.mxu0 0.0
  %126 = vmatprep.subr.mxu0 0.0
  %127 = vmatpush1.msra.mxu0 0.0
  %128 = vmatprep.subr.mxu0 0.0
  %129 = vmatpush1.msra.mxu0 0.0
  %130 = vmatprep.subr.mxu0 0.0
  %131 = vmatpush1.msra.mxu0 0.0
  %132 = vmatprep.subr.mxu0 0.0
  %133 = vmatpush1.msra.mxu0 0.0
  %134 = vmatprep.subr.mxu0 0.0
  %135 = vmatpush1.msra.mxu0 0.0
  %136 = vmatprep.subr.mxu0 0.0
  %137 = vmatpush1.msra.mxu0 0.0
  %138 = vmatprep.subr.mxu0 0.0
  %139 = vmatpush1.msra.mxu0 0.0
  %140 = vmatprep.subr.mxu0 0.0
  %141 = vmatpush1.msra.mxu0 0.0
  %142 = vmatprep.subr.mxu0 0.0
  %143 = vmatpush1.msra.mxu0 0.0
  %144 = vmatprep.subr.mxu0 %v49
  %145 = vmatpush1.msra.mxu0 %v46
  %146 = vmatprep.subr.mxu0 %v29
  %147 = vmatpush1.msra.mxu0 %v28
  %148 = vmatprep.subr.mxu0 %v25
  %149 = vmatpush1.msra.mxu0 %v24
  %150 = vmatprep.subr.mxu0 %v21
  %151 = vmatpush1.msra.mxu0 %v20
  %152 = vmatprep.subr.mxu0 %v17
  %153 = vmatpush1.msra.mxu0 %v16
  %154 = vmatprep.subr.mxu0 0.0
  %155 = vmatpush2.msra.mxu0 0.0
  %156 = vmatprep.subr.mxu0 0.0
  %157 = vmatpush2.msra.mxu0 0.0
  %158 = vmatprep.subr.mxu0 0.0
  %159 = vmatpush2.msra.mxu0 0.0
  %160 = vmatprep.subr.mxu0 0.0
  %161 = vmatpush2.msra.mxu0 0.0
  %162 = vmatprep.subr.mxu0 0.0
  %163 = vmatpush2.msra.mxu0 0.0
  %164 = vmatprep.subr.mxu0 0.0
  %165 = vmatpush2.msra.mxu0 0.0
  %166 = vmatprep.subr.mxu0 0.0
  %167 = vmatpush2.msra.mxu0 0.0
  %168 = vmatprep.subr.mxu0 0.0
  %169 = vmatpush2.msra.mxu0 0.0
  %170 = vmatprep.subr.mxu0 0.0
  %171 = vmatpush2.msra.mxu0 0.0
  %172 = vmatprep.subr.mxu0 0.0
  %173 = vmatpush2.msra.mxu0 0.0
  %174 = vmatprep.subr.mxu0 0.0
  %175 = vmatpush2.msra.mxu0 0.0
  %176 = vmatprep.subr.mxu0 0.0
  %177 = vmatpush2.msra.mxu0 0.0
  %178 = vmatprep.subr.mxu0 0.0
  %179 = vmatpush2.msra.mxu0 0.0
  %180 = vmatprep.subr.mxu0 0.0
  %181 = vmatpush2.msra.mxu0 0.0
  %182 = vmatprep.subr.mxu0 0.0
  %183 = vmatpush2.msra.mxu0 0.0
  %184 = vmatprep.subr.mxu0 0.0
  %185 = vmatpush2.msra.mxu0 0.0
  %186 = vmatprep.mubr.f32.mxu0 0.0
  %187 = vmatmul.mubr.f32.gmra.mxu0 %v36
  %v188 = vpop.f32.mrf.mxu0
  %v189 = vadd.f32 0.0, %v188
  %v190 = vpop.f32.mrf.mxu0
  %v191 = vadd.f32 0.0, %v190
  %192 = vdwg.mxu0
  %193 = vst [vmem:[%s2] sm:$0xff] %v118
  %194 = vst [vmem:[%s2 + $0x8] sm:$0xff] %v120
  %195 = vst [vmem:[%s2 + $0x10] sm:$0xff] %v189
  %196 = vst [vmem:[%s2 + $0x18] sm:$0xff] %v191
  %v197 = vadd.f32 %v118, %v120
  %v198 = vadd.f32 %v197, %v189
  %v199 = vadd.f32 %v198, %v191
  %200 = vadd.xlane.f32.xlu0 %v199
  %v201 = vpop.xlane.xlu0 %200
  %vm202 = vcmask 7168
  %203 = vst.msk [vmem:[%s3] sm:$0xff] %vm202, %v201
  %v204 = vmul.f32 %v118, %v118
  %v205 = vmul.f32 %v120, %v120
  %v206 = vmul.f32 %v189, %v189
  %v207 = vmul.f32 %v191, %v191
  %v208 = vadd.f32 %v204, %v205
  %v209 = vadd.f32 %v208, %v206
  %v210 = vadd.f32 %v209, %v207
  %211 = vadd.xlane.f32.xlu0 %v210
  %v212 = vpop.xlane.xlu0 %211
  %vm213 = vcmask 15368
  %214 = vst.msk [vmem:[%s3] sm:$0xff] %vm213, %v212
  // Predicated region
  $region10: #{atrous_module_forward.1} parent=0 // pred_check
    _
  $region11: #{atrous_module_forward.1} parent=0 // pred_check_branch
    %216 = sbr.rel (0) target = $region13
  $region12: #{atrous_module_forward.1} parent=0 // pred_region
    _
  $region13: #{atrous_module_forward.1} parent=0 // pred_fallthru
    _
  // Predicated region
  $region14: #{atrous_module_forward.1} parent=0 // pred_check
    _
  $region15: #{atrous_module_forward.1} parent=0 // pred_check_branch
    %218 = sbr.rel (0) target = $region17
  $region16: #{atrous_module_forward.1} parent=0 // pred_region
    _
  $region17: #{atrous_module_forward.1} parent=0 // pred_fallthru
    _
  // Predicated region
  $region18: #{atrous_module_forward.1} parent=0 // pred_check
    _
  $region19: #{atrous_module_forward.1} parent=0 // pred_check_branch
    %220 = sbr.rel (0) target = $region21
  $region20: #{atrous_module_forward.1} parent=0 // pred_region
    _
  $region21: #{atrous_module_forward.1} parent=0 // pred_fallthru
    _
  // Predicated region
  $region22: #{atrous_module_forward.1} parent=0 // pred_check
    _
  $region23: #{atrous_module_forward.1} parent=0 // pred_check_branch
    %222 = sbr.rel (0) target = $region25
  $region24: #{atrous_module_forward.1} parent=0 // pred_region
    _
  $region25: #{atrous_module_forward.1} parent=0 // pred_fallthru
    _

</llo_original>
